<compile_context>
chip_gen: v7x
topology: tpu7x:2x2x1
jax: 0.10.0
libtpu: 0.0.40
codegen_flags: <defaults>
</compile_context>

<pallas_src>
import math

import jax
import jax.numpy as jnp
from jax.experimental import pallas as pl
from jax.experimental.pallas import tpu as pltpu


_VMEM_LIMIT = 32 * 1024 * 1024  # safe on v5e (128 MiB phys), v6e (128), v7x (64)


def _round_up(v, m):
    return ((v + m - 1) // m) * m


# ---------------------------------------------------------------------------
# Kernel 1: tiny LoRA down projection  down = x @ W_down^T   -> [Mp, Rp]
# ---------------------------------------------------------------------------
def _down_kernel(x_ref, wdown_ref, o_ref, acc_ref):
    """x_ref: [tm, tk] bf16; wdown_ref: [tk, Rp] bf16; o_ref: [tm, Rp]."""
    k = pl.program_id(1)

    @pl.when(k == 0)
    def _init():
        acc_ref[...] = jnp.zeros_like(acc_ref)

    acc_ref[...] += jnp.dot(x_ref[...], wdown_ref[...],
                            preferred_element_type=jnp.float32)

    @pl.when(k == pl.num_programs(1) - 1)
    def _finalize():
        o_ref[...] = acc_ref[...].astype(o_ref.dtype)


# ---------------------------------------------------------------------------
# Kernel 2: base matmul over K + LoRA up-projection at finalize.
# f32-output variant: accumulate directly into the resident output block.
# ---------------------------------------------------------------------------
def _lora_kernel_f32out(x_ref, wlin_ref, down_ref, wup_ref, o_ref):
    k = pl.program_id(2)

    @pl.when(k == 0)
    def _init():
        o_ref[...] = jnp.zeros_like(o_ref)

    o_ref[...] += jnp.dot(x_ref[...], wlin_ref[...],
                          preferred_element_type=jnp.float32)

    @pl.when(k == pl.num_programs(2) - 1)
    def _finalize():
        # bf16 x bf16 up-projection; scaling (alpha/r) folded into wup at prep.
        o_ref[...] += jnp.dot(down_ref[...], wup_ref[...],
                              preferred_element_type=jnp.float32)


# Non-f32 output variant: f32 scratch accumulator, single cast at finalize.
def _lora_kernel_acc(x_ref, wlin_ref, down_ref, wup_ref, o_ref, acc_ref):
    k = pl.program_id(2)

    @pl.when(k == 0)
    def _init():
        acc_ref[...] = jnp.zeros_like(acc_ref)

    acc_ref[...] += jnp.dot(x_ref[...], wlin_ref[...],
                            preferred_element_type=jnp.float32)

    @pl.when(k == pl.num_programs(2) - 1)
    def _finalize():
        lora = jnp.dot(down_ref[...], wup_ref[...],
                       preferred_element_type=jnp.float32)
        o_ref[...] = (acc_ref[...] + lora).astype(o_ref.dtype)


# ---------------------------------------------------------------------------
# One-time parameter preparation (hoisted out of the per-call path).
# ---------------------------------------------------------------------------
def prepare_lora_params(w_lin, w_down, w_up, *, alpha=16.0,
                        tn=512, tk=1024, compute_dtype=jnp.bfloat16):
    """w_lin: [out, in]; w_down: [r, in]; w_up: [out, r]."""
    N, K = w_lin.shape
    r = w_down.shape[0]
    scaling = alpha / r
    cd = jnp.dtype(compute_dtype)

    # Clamp tile sizes to the aligned problem, keep (8, 128) layout rules.
    tn = min(tn, _round_up(N, 128))
    tk = min(tk, _round_up(K, 128))
    Np, Kp, Rp = _round_up(N, tn), _round_up(K, tk), _round_up(r, 8)

    # W_lin repacked once as [Kp, Np]: MXU-natural layout, lane-dense N.
    wlin_kn = jnp.zeros((Kp, Np), cd).at[:K, :N].set(
        jnp.transpose(w_lin).astype(cd))
    # W_down repacked as [Kp, Rp].
    wdown_kr = jnp.zeros((Kp, Rp), cd).at[:K, :r].set(
        jnp.transpose(w_down).astype(cd))
    # W_up^T as [Rp, Np] with scaling folded in (one-time tiny scale).
    wup_rn = jnp.zeros((Rp, Np), cd).at[:r, :N].set(
        (scaling * jnp.transpose(w_up)).astype(cd))

    return dict(wlin_kn=wlin_kn, wdown_kr=wdown_kr, wup_rn=wup_rn,
                N=N, K=K, r=r, tn=tn, tk=tk, Np=Np, Kp=Kp, Rp=Rp,
                compute_dtype=cd)


# ---------------------------------------------------------------------------
# Forward pass.
# ---------------------------------------------------------------------------
def lora_linear_forward(x, params, *, tm=512, out_dtype=None):
    """x: [..., in_features]; params: output of prepare_lora_params."""
    N, K, r = params["N"], params["K"], params["r"]
    tn, tk = params["tn"], params["tk"]
    Np, Kp, Rp = params["Np"], params["Kp"], params["Rp"]
    cd = params["compute_dtype"]

    lead = x.shape[:-1]
    x2d = x.reshape(-1, K)
    M = x2d.shape[0]
    out_dtype = jnp.dtype(out_dtype) if out_dtype is not None else x.dtype

    tm = min(tm, _round_up(M, 8))
    Mp = _round_up(M, tm)
    # v7x megacore: if both parallel axes collapse to extent 1, split M so
    # both TensorCores get work.
    if Mp // tm == 1 and Np // tn == 1 and Mp > 8:
        tm = _round_up((Mp + 1) // 2, 8)
        Mp = _round_up(M, tm)

    # Per-call work: only pad/cast x (skipped when already aligned).
    if (M, K) == (Mp, Kp) and x2d.dtype == cd:
        xp = x2d
    else:
        xp = jnp.zeros((Mp, Kp), cd).at[:M, :K].set(x2d.astype(cd))

    grid_m, grid_n, grid_k = Mp // tm, Np // tn, Kp // tk

    # --- 1) LoRA down-projection (hoisted out of the main hot loop). --------
    down_p = pl.pallas_call(
        _down_kernel,
        out_shape=jax.ShapeDtypeStruct((Mp, Rp), cd),
        grid_spec=pltpu.PrefetchScalarGridSpec(
            num_scalar_prefetch=0,
            grid=(grid_m, grid_k),
            in_specs=[
                pl.BlockSpec((tm, tk), lambda i, k: (i, k)),   # x  [M, K]
                pl.BlockSpec((tk, Rp), lambda i, k: (k, 0)),   # Wd [K, r]
            ],
            out_specs=pl.BlockSpec((tm, Rp), lambda i, k: (i, 0)),
            scratch_shapes=[pltpu.VMEM((tm, Rp), jnp.float32)],
        ),
        compiler_params=pltpu.CompilerParams(
            dimension_semantics=("parallel", "arbitrary"),
            vmem_limit_bytes=_VMEM_LIMIT),
    )(xp, params["wdown_kr"])

    # --- 2) Base matmul + up-projection finalize. ----------------------------
    f32_out = out_dtype == jnp.dtype(jnp.float32)
    kernel = _lora_kernel_f32out if f32_out else _lora_kernel_acc
    scratch = [] if f32_out else [pltpu.VMEM((tm, tn), jnp.float32)]

    itemsize = cd.itemsize
    cost = pl.CostEstimate(
        flops=2 * M * N * K + 2 * M * r * N,
        transcendentals=0,
        bytes_accessed=int(
            Mp * Kp * itemsize * grid_n            # x re-streamed per N tile
            + Kp * Np * itemsize * grid_m          # W_lin re-streamed per M tile
            + Mp * Rp * itemsize                   # down intermediate (per i)
            + Rp * Np * itemsize * grid_m          # W_up^T re-streamed per M tile
            + Mp * Np * jnp.dtype(out_dtype).itemsize))

    out_p = pl.pallas_call(
        kernel,
        out_shape=jax.ShapeDtypeStruct((Mp, Np), out_dtype),
        grid_spec=pltpu.PrefetchScalarGridSpec(
            num_scalar_prefetch=0,
            grid=(grid_m, grid_n, grid_k),
            in_specs=[
                pl.BlockSpec((tm, tk), lambda i, j, k: (i, k)),   # x     [M, K]
                pl.BlockSpec((tk, tn), lambda i, j, k: (k, j)),   # W_lin [K, N]
                pl.BlockSpec((tm, Rp), lambda i, j, k: (i, 0)),   # down  [M, r]
                pl.BlockSpec((Rp, tn), lambda i, j, k: (0, j)),   # W_up^T[r, N]
            ],
            out_specs=pl.BlockSpec((tm, tn), lambda i, j, k: (i, j)),
            scratch_shapes=scratch,
        ),
        compiler_params=pltpu.CompilerParams(
            dimension_semantics=("parallel", "parallel", "arbitrary"),
            vmem_limit_bytes=_VMEM_LIMIT),
        cost_estimate=cost,
    )(xp, params["wlin_kn"], down_p, params["wup_rn"])

    return out_p[:M, :N].reshape(*lead, N)


def init_params(key, in_features, out_features, r):
    """Deterministic parameter init mirroring the PyTorch module."""
    k_lin, k_down = jax.random.split(key, 2)
    # nn.Linear / kaiming_uniform(a=sqrt(5)) -> U(+-1/sqrt(fan_in))
    bound = 1.0 / math.sqrt(in_features)
    w_lin = jax.random.uniform(k_lin, (out_features, in_features),
                               jnp.float32, -bound, bound)
    w_down = jax.random.uniform(k_down, (r, in_features),
                                jnp.float32, -bound, bound)
    w_up = jnp.zeros((out_features, r), jnp.float32)   # lora_up init = zeros
    return w_lin, w_down, w_up


if __name__ == "__main__":
    key = jax.random.PRNGKey(0)
    batch, seq = 2, 8
    in_features, out_features, r, alpha = 32, 32, 8, 16.0
    scaling = alpha / r

    k_x, k_p, k_up = jax.random.split(key, 3)
    x = jax.random.normal(k_x, (batch, seq, in_features), jnp.float32)
    w_lin, w_down, w_up = init_params(k_p, in_features, out_features, r)

    # 1) Faithful init (lora_up == 0): LoRA branch contributes nothing.
    params = prepare_lora_params(w_lin, w_down, w_up, alpha=alpha)
    out = jax.block_until_ready(lora_linear_forward(x, params))
    ref = x @ w_lin.T + scaling * ((x @ w_down.T) @ w_up.T)
    assert out.shape == (batch, seq, out_features)
    assert jnp.allclose(out, ref, atol=2e-2, rtol=2e-2)

    # 2) Non-zero lora_up to exercise the full LoRA path.
    w_up2 = jax.random.uniform(k_up, (out_features, r), jnp.float32,
                               -1.0 / math.sqrt(r), 1.0 / math.sqrt(r))
    params2 = prepare_lora_params(w_lin, w_down, w_up2, alpha=alpha)
    out2 = jax.block_until_ready(lora_linear_forward(x, params2))
    ref2 = x @ w_lin.T + scaling * ((x @ w_down.T) @ w_up2.T)
    assert jnp.allclose(out2, ref2, atol=2e-2, rtol=2e-2)

    print("KERNEL_OK")
</pallas_src>

<mosaic_0001>
module attributes {stable_mosaic.version = 11 : i64} {
  func.func @_down_kernel(%arg0: i32, %arg1: i32, %arg2: memref<8x128xbf16, #tpu.memory_space<vmem>>, %arg3: memref<128x8xbf16, #tpu.memory_space<vmem>>, %arg4: memref<8x8xbf16, #tpu.memory_space<vmem>>, %arg5: memref<8x8xf32, #tpu.memory_space<vmem>>) attributes {dimension_semantics = [#tpu.dimension_semantics<parallel>, #tpu.dimension_semantics<arbitrary>], iteration_bounds = array<i64: 2, 1>, scalar_prefetch = 0 : i64, scratch_operands = 1 : i64, tpu.core_type = #tpu.core_type<tc>, window_params = [{transform_indices = @transform_0, window_bounds = array<i64: 8, 128>}, {transform_indices = @transform_1, window_bounds = array<i64: 128, 8>}, {transform_indices = @transform_2, window_bounds = array<i64: 8, 8>}]} {
    %c0_i32 = arith.constant 0 : i32
    %0 = arith.cmpi eq, %arg1, %c0_i32 : i32
    %1 = arith.extui %0 : i1 to i32
    %c0_i32_0 = arith.constant 0 : i32
    %2 = arith.cmpi ne, %1, %c0_i32_0 : i32
    scf.if %2 {
      %cst_10 = arith.constant 0.000000e+00 : f32
      %12 = vector.broadcast %cst_10 : f32 to vector<8x8xf32>
      %c0_11 = arith.constant 0 : index
      %c0_12 = arith.constant 0 : index
      %13 = vector.load %arg5[%c0_11, %c0_12] : memref<8x8xf32, #tpu.memory_space<vmem>>, vector<8x8xf32>
      tpu.vector_store %arg5[%c0_11, %c0_12], %12 {strides = array<i32>} : memref<8x8xf32, #tpu.memory_space<vmem>>, vector<8x8xf32>,
    } else {
    }
    %c0 = arith.constant 0 : index
    %c0_1 = arith.constant 0 : index
    %3 = vector.load %arg5[%c0, %c0_1] : memref<8x8xf32, #tpu.memory_space<vmem>>, vector<8x8xf32>
    %c0_2 = arith.constant 0 : index
    %c0_3 = arith.constant 0 : index
    %4 = vector.load %arg2[%c0_2, %c0_3] : memref<8x128xbf16, #tpu.memory_space<vmem>>, vector<8x128xbf16>
    %c0_4 = arith.constant 0 : index
    %c0_5 = arith.constant 0 : index
    %5 = vector.load %arg3[%c0_4, %c0_5] : memref<128x8xbf16, #tpu.memory_space<vmem>>, vector<128x8xbf16>
    %cst = arith.constant dense<0.000000e+00> : vector<8x8xf32>
    %6 = tpu.matmul %4, %5, %cst {dimension_numbers = #tpu.dot_dimension_numbers<[1], [0], [0], [1], [0, 0, 1, 1], [], []>} : vector<8x128xbf16>, vector<128x8xbf16>, vector<8x8xf32> -> vector<8x8xf32>
    %7 = arith.addf %3, %6 : vector<8x8xf32>
    %c0_6 = arith.constant 0 : index
    %c0_7 = arith.constant 0 : index
    %8 = vector.load %arg5[%c0_6, %c0_7] : memref<8x8xf32, #tpu.memory_space<vmem>>, vector<8x8xf32>
    tpu.vector_store %arg5[%c0_6, %c0_7], %7 {strides = array<i32>} : memref<8x8xf32, #tpu.memory_space<vmem>>, vector<8x8xf32>,
    %c0_i32_8 = arith.constant 0 : i32
    %9 = arith.cmpi eq, %arg1, %c0_i32_8 : i32
    %10 = arith.extui %9 : i1 to i32
    %c0_i32_9 = arith.constant 0 : i32
    %11 = arith.cmpi ne, %10, %c0_i32_9 : i32
    scf.if %11 {
      %c0_10 = arith.constant 0 : index
      %c0_11 = arith.constant 0 : index
      %12 = vector.load %arg5[%c0_10, %c0_11] : memref<8x8xf32, #tpu.memory_space<vmem>>, vector<8x8xf32>
      %13 = arith.truncf %12 : vector<8x8xf32> to vector<8x8xbf16>
      %c0_12 = arith.constant 0 : index
      %c0_13 = arith.constant 0 : index
      %14 = vector.load %arg4[%c0_12, %c0_13] : memref<8x8xbf16, #tpu.memory_space<vmem>>, vector<8x8xbf16>
      tpu.vector_store %arg4[%c0_12, %c0_13], %13 {strides = array<i32>} : memref<8x8xbf16, #tpu.memory_space<vmem>>, vector<8x8xbf16>,
    } else {
    }
    return
  }
  func.func @transform_0(%arg0: i32, %arg1: i32) -> (i32, i32) {
    %c0_i32 = arith.constant 0 : i32
    return %arg0, %arg1 : i32, i32
  }
  func.func @transform_1(%arg0: i32, %arg1: i32) -> (i32, i32) {
    %c0_i32 = arith.constant 0 : i32
    %c0_i32_0 = arith.constant 0 : i32
    return %arg1, %c0_i32 : i32, i32
  }
  func.func @transform_2(%arg0: i32, %arg1: i32) -> (i32, i32) {
    %c0_i32 = arith.constant 0 : i32
    %c0_i32_0 = arith.constant 0 : i32
    return %arg0, %c0_i32 : i32, i32
  }
}

</mosaic_0001>

<llo_original>
// kernel: tpu_custom_call.1
$region0: #{tpu_custom_call.1}
  #allocation0 [shape = 'u32[]', space=smem, size = 0x4, offset = 0x4, fixed_abs, tag = 'smem constant byte address 0x4 - core index']
  #allocation1 [shape = 'u32[144,128]{1,0:T(1,128)}', space=vmem, size = 0x12000, scoped, tag = 'internal scratch']
  #allocation2 [shape = 'f32[8,8]{1,0:T(8,128)}', space=vmem, size = 0x1000, scoped, tag = 'scratch operand']
  %s0 = inlined_call_operand.vmem [shape: bf16[16,128], index: 0, kind: input, shape index: {}]
  %s1 = inlined_call_operand.vmem [shape: bf16[128,8], index: 1, kind: input, shape index: {}]
  %s2 = inlined_call_operand.vmem [shape: bf16[16,8], index: 2, kind: output, shape index: {}]
  %s3 = sld [smem:[#allocation0]]
  $region49: #{tpu_custom_call.1} parent=0
    _
  %s5 = ssub.s32 1, %s3
  %s6 = scalar_select 0, %s5, %s3
  loop: start=0, step=1, limit=4
  $region2: #{tpu_custom_call.1} parent=0 // loop_pre_header
    _
  $region3: #{tpu_custom_call.1} parent=0 // loop_header
    %s8 = sphi 0, %s12
    %p9 = scmp.ge.s32.totalorder %s8, 4
    %s15 = sphi 0, %s27
    %s16 = sphi 0, %s23
    %s17 = sphi 0, %s15
    %s18 = sphi 0, %s16
    %s19 = sphi 0, %s17
    %s20 = sphi 0, %s18
    %s32 = sphi 0, %s34
    %s35 = sphi 0, %s32
    %s36 = sphi 0, %s35
    %s52 = sphi 0, %s36
    %s58 = sphi 0, %s60
    %s61 = sphi 0, %s58
    %s62 = sphi 0, %s61
    %s78 = sphi 0, %s62
    %s84 = sphi 0, %s86
    %s87 = sphi 0, %s84
    %s88 = sphi 0, %s87
    %s104 = sphi 0, %s88
  $region4: #{tpu_custom_call.1} parent=0 // loop_header_branch
    %11 = sbr.rel (%p9) target = $region8
  $region5: #{tpu_custom_call.1} parent=0 // loop_body
    %s13 = ssub.s32 %s8, 1
    %s14 = ssub.s32 %s8, 2
    %s21 = sadd.s32 1, %s16
    %p22 = scmp.ge.s32.totalorder %s21, 1
    %s23 = scalar_select %p22, 0, %s21
    %s24 = sadd.s32 1, %s15
    %s25 = scalar_select %p22, %s24, %s15
    %p26 = scmp.ge.s32.totalorder %s25, 2
    %s27 = scalar_select %p26, 0, %s25
    %s28 = ssub.s32 %s15, %s27
    %s29 = ssub.s32 %s16, %s23
    %s30 = sor.u32 %s28, %s29
    %p31 = scmp.eq.s32.totalorder %s30, 0
    %s33 = sadd.s32 %s32, 1
    %s34 = scalar_select %p31, %s32, %s33
    %p37 = pneg %p31
    %p38 = scmp.eq.s32.totalorder %s8, 1
    %p39 = por %p37, %p38
    %p40 = scmp.ne.s32.totalorder %s32, %s35
    %p41 = scmp.eq.s32.totalorder %s8, 0
    %p42 = por %p40, %p41
    %p43 = scmp.ne.s32.totalorder %s32, %s35
    %p44 = scmp.eq.s32.totalorder %s13, 1
    %p45 = por %p43, %p44
    %p46 = scmp.ne.s32.totalorder %s35, %s36
    %p47 = scmp.eq.s32.totalorder %s13, 0
    %p48 = por %p46, %p47
    %p49 = scmp.ne.s32.totalorder %s35, %s36
    %p50 = scmp.eq.s32.totalorder %s14, 1
    %p51 = por %p49, %p50
    %p53 = scmp.ne.s32.totalorder %s36, %s52
    %p54 = scmp.eq.s32.totalorder %s14, 0
    %p55 = por %p53, %p54
    %s56 = ssub.s32 %s16, %s23
    %p57 = scmp.eq.s32.totalorder %s56, 0
    %s59 = sadd.s32 %s58, 1
    %s60 = scalar_select %p57, %s58, %s59
    %p63 = pneg %p57
    %p64 = scmp.eq.s32.totalorder %s8, 1
    %p65 = por %p63, %p64
    %p66 = scmp.ne.s32.totalorder %s58, %s61
    %p67 = scmp.eq.s32.totalorder %s8, 0
    %p68 = por %p66, %p67
    %p69 = scmp.ne.s32.totalorder %s58, %s61
    %p70 = scmp.eq.s32.totalorder %s13, 1
    %p71 = por %p69, %p70
    %p72 = scmp.ne.s32.totalorder %s61, %s62
    %p73 = scmp.eq.s32.totalorder %s13, 0
    %p74 = por %p72, %p73
    %p75 = scmp.ne.s32.totalorder %s61, %s62
    %p76 = scmp.eq.s32.totalorder %s14, 1
    %p77 = por %p75, %p76
    %p79 = scmp.ne.s32.totalorder %s62, %s78
    %p80 = scmp.eq.s32.totalorder %s14, 0
    %p81 = por %p79, %p80
    %s82 = ssub.s32 %s15, %s27
    %p83 = scmp.eq.s32.totalorder %s82, 0
    %s85 = sadd.s32 %s84, 1
    %s86 = scalar_select %p83, %s84, %s85
    %p89 = pneg %p83
    %p90 = scmp.eq.s32.totalorder %s8, 1
    %p91 = por %p89, %p90
    %p92 = scmp.ne.s32.totalorder %s84, %s87
    %p93 = scmp.eq.s32.totalorder %s8, 0
    %p94 = por %p92, %p93
    %p95 = scmp.ne.s32.totalorder %s84, %s87
    %p96 = scmp.eq.s32.totalorder %s13, 1
    %p97 = por %p95, %p96
    %p98 = scmp.ne.s32.totalorder %s87, %s88
    %p99 = scmp.eq.s32.totalorder %s13, 0
    %p100 = por %p98, %p99
    %p101 = scmp.ne.s32.totalorder %s87, %s88
    %p102 = scmp.eq.s32.totalorder %s14, 1
    %p103 = por %p101, %p102
    %p105 = scmp.ne.s32.totalorder %s88, %s104
    %p106 = scmp.eq.s32.totalorder %s14, 0
    %p107 = por %p105, %p106
    %p108 = scmp.le.s32.totalorder 1, %s8
    %p109 = scmp.lt.s32.totalorder %s8, 3
    %p110 = pnand %p108, %p109
    %p111 = pneg %p110
    // Predicated region
    $region9: #{tpu_custom_call.1} parent=5 // pred_check
      _
    $region10: #{tpu_custom_call.1} parent=5 // pred_check_branch
      %113 = sbr.rel (%p110) target = $region12
    $region11: #{tpu_custom_call.1} parent=5 // pred_region
      %s114 = ssub.s32 %s8, 1
      // Predicated region
      $region13: #{tpu_custom_call.1} parent=11 // pred_check
        %p115 = pneg %p74
      $region14: #{tpu_custom_call.1} parent=11 // pred_check_branch
        %117 = sbr.rel (%p115) target = $region16
      $region15: #{tpu_custom_call.1} parent=11 // pred_region
        %s118 = smul.u32 16, %s18
        %p119 = scmp.lt.s32.totalorder %s118, 15
        %s120 = scalar_select %p119, %s118, 15
        %s121 = smul.addr %s120, 4
        %s122 = scalar_lea.vmem %s1, %s121
        %s123 = smul.u32 16, %s18
      $region16: #{tpu_custom_call.1} parent=11 // pred_fallthru
        _
    $region12: #{tpu_custom_call.1} parent=5 // pred_fallthru
      _
    %p124 = scmp.lt.s32.totalorder %s8, 2
    // Predicated region
    $region17: #{tpu_custom_call.1} parent=5 // pred_check
      %p125 = pneg %p124
    $region18: #{tpu_custom_call.1} parent=5 // pred_check_branch
      %127 = sbr.rel (%p125) target = $region20
    $region19: #{tpu_custom_call.1} parent=5 // pred_region
      // Predicated region
      $region21: #{tpu_custom_call.1} parent=19 // pred_check
        %p128 = pneg %p42
      $region22: #{tpu_custom_call.1} parent=19 // pred_check_branch
        %130 = sbr.rel (%p128) target = $region24
      $region23: #{tpu_custom_call.1} parent=19 // pred_region
        %p131 = scmp.lt.s32.totalorder %s15, 1
        %s132 = scalar_select %p131, %s15, 1
        %p133 = scmp.lt.s32.totalorder %s16, 0
        %s134 = scalar_select %p133, %s16, 0
        %s135 = sadd.s32 %s134, %s132
        %s136 = smul.addr %s135, 4
        %s137 = scalar_lea.vmem %s0, %s136
      $region24: #{tpu_custom_call.1} parent=19 // pred_fallthru
        _
    $region20: #{tpu_custom_call.1} parent=5 // pred_fallthru
      _
    %p138 = scmp.le.s32.totalorder 1, %s8
    %p139 = scmp.lt.s32.totalorder %s8, 3
    %p140 = pnand %p138, %p139
    %p141 = pneg %p140
    // Predicated region
    $region25: #{tpu_custom_call.1} parent=5 // pred_check
      _
    $region26: #{tpu_custom_call.1} parent=5 // pred_check_branch
      %143 = sbr.rel (%p140) target = $region28
    $region27: #{tpu_custom_call.1} parent=5 // pred_region
      %s144 = ssub.s32 %s8, 1
      %p145 = scmp.lt.s32.totalorder %s17, 1
      %s146 = scalar_select %p145, %s17, 1
      %p147 = scmp.lt.s32.totalorder %s18, 0
      %s148 = scalar_select %p147, %s18, 0
      %s149 = sadd.s32 %s148, %s146
      %s150 = smul.addr %s149, 4
      %s151 = scalar_lea.vmem %s0, %s150
      %p152 = pneg %p48
      %p153 = pneg %p45
      %s154 = smul.u32 16, %s18
      %p155 = scmp.lt.s32.totalorder %s154, 15
      %s156 = scalar_select %p155, %s154, 15
      %s157 = smul.addr %s156, 4
      %s158 = scalar_lea.vmem %s1, %s157
      %p159 = pneg %p74
      %p160 = pneg %p71
      %p161 = pneg %p100
      %p162 = pneg %p97
      %p163 = scmp.lt.s32.totalorder %s17, 1
      %s164 = scalar_select %p163, %s17, 1
      %s165 = smul.addr %s164, 4
      %s166 = scalar_lea.vmem %s2, %s165
      %p167 = scmp.lt.s32.totalorder %s17, 1
      %s168 = scalar_select %p167, %s17, 1
      %p169 = scmp.lt.s32.totalorder %s18, 0
      %s170 = scalar_select %p169, %s18, 0
      %s171 = sadd.s32 %s170, %s168
      %s172 = smul.addr %s171, 4
      %s173 = scalar_lea.vmem %s0, %s172
      %s174 = smul.u32 16, %s18
      %p175 = scmp.lt.s32.totalorder %s174, 15
      %s176 = scalar_select %p175, %s174, 15
      %s177 = smul.addr %s176, 4
      %s178 = scalar_lea.vmem %s1, %s177
      %s179 = smul.u32 16, %s18
      %p180 = scmp.lt.s32.totalorder %s17, 1
      %s181 = scalar_select %p180, %s17, 1
      %s182 = smul.addr %s181, 4
      %s183 = scalar_lea.vmem %s2, %s182
      %p185 = scmp.eq.s32.totalorder %s18, 0
      // Predicated region
      $region29: #{tpu_custom_call.1} parent=27 // pred_check
        %p186 = pneg %p185
      $region30: #{tpu_custom_call.1} parent=27 // pred_check_branch
        %188 = sbr.rel (%p186) target = $region32
      $region31: #{tpu_custom_call.1} parent=27 // pred_region
        %vm189 = vcmask 64512
        %190 = vst.msk [vmem:[#allocation2] sm:$0xff] %vm189, 0.0
      $region32: #{tpu_custom_call.1} parent=27 // pred_fallthru
        _
      %v191 = vld [vmem:[#allocation2] sm:$0xff]
      %v192 = vld [vmem:[%s173] sm:$0xf]
      %v193 = vld [vmem:[%s178] sm:$0xf]
      %v194 = vld [vmem:[%s178 + $0x4] sm:$0xf]
      %v195 = vld [vmem:[%s178 + $0x8] sm:$0xf]
      %v196 = vld [vmem:[%s178 + $0xc] sm:$0xf]
      %v197 = vld [vmem:[%s178 + $0x10] sm:$0xf]
      %v198 = vld [vmem:[%s178 + $0x14] sm:$0xf]
      %v199 = vld [vmem:[%s178 + $0x18] sm:$0xf]
      %v200 = vld [vmem:[%s178 + $0x1c] sm:$0xf]
      %v201 = vld [vmem:[%s178 + $0x20] sm:$0xf]
      %v202 = vld [vmem:[%s178 + $0x24] sm:$0xf]
      %v203 = vld [vmem:[%s178 + $0x28] sm:$0xf]
      %v204 = vld [vmem:[%s178 + $0x2c] sm:$0xf]
      %v205 = vld [vmem:[%s178 + $0x30] sm:$0xf]
      %v206 = vld [vmem:[%s178 + $0x34] sm:$0xf]
      %v207 = vld [vmem:[%s178 + $0x38] sm:$0xf]
      %v208 = vld [vmem:[%s178 + $0x3c] sm:$0xf]
      %v225 = vunpack.c.l.b16 %v193
      %v226 = vunpack.c.l.b16 %v194
      %v227 = vunpack.c.l.b16 %v195
      %v228 = vunpack.c.l.b16 %v196
      %v229 = vunpack.c.l.b16 %v197
      %v230 = vunpack.c.l.b16 %v198
      %v231 = vunpack.c.l.b16 %v199
      %v232 = vunpack.c.l.b16 %v200
      %v233 = vunpack.c.l.b16 %v201
      %v234 = vunpack.c.l.b16 %v202
      %v235 = vunpack.c.l.b16 %v203
      %v236 = vunpack.c.l.b16 %v204
      %v237 = vunpack.c.l.b16 %v205
      %v238 = vunpack.c.l.b16 %v206
      %v239 = vunpack.c.l.b16 %v207
      %v240 = vunpack.c.l.b16 %v208
      %v241 = vpack.c.b16 %v226, %v225
      %v242 = vpack.c.b16 %v228, %v227
      %v243 = vpack.c.b16 %v230, %v229
      %v244 = vpack.c.b16 %v232, %v231
      %v245 = vpack.c.b16 %v234, %v233
      %v246 = vpack.c.b16 %v236, %v235
      %v247 = vpack.c.b16 %v238, %v237
      %v248 = vpack.c.b16 %v240, %v239
      %257 = vmatprep.subr.bf16.mxu0 0
      %258 = vmatpush1.bf16.msra.mxu0 %v241
      %259 = vmatprep.subr.bf16.mxu0 0
      %260 = vmatpush1.bf16.msra.mxu0 %v242
      %261 = vmatprep.subr.bf16.mxu0 0
      %262 = vmatpush1.bf16.msra.mxu0 %v243
      %263 = vmatprep.subr.bf16.mxu0 0
      %264 = vmatpush1.bf16.msra.mxu0 %v244
      %265 = vmatprep.subr.bf16.mxu0 0
      %266 = vmatpush1.bf16.msra.mxu0 %v245
      %267 = vmatprep.subr.bf16.mxu0 0
      %268 = vmatpush1.bf16.msra.mxu0 %v246
      %269 = vmatprep.subr.bf16.mxu0 0
      %270 = vmatpush1.bf16.msra.mxu0 %v247
      %271 = vmatprep.subr.bf16.mxu0 0
      %272 = vmatpush1.bf16.msra.mxu0 %v248
      %273 = vmatprep.subr.bf16.mxu0 0
      %274 = vmatpush1.bf16.msra.mxu0 0
      %275 = vmatprep.subr.bf16.mxu0 0
      %276 = vmatpush1.bf16.msra.mxu0 0
      %277 = vmatprep.subr.bf16.mxu0 0
      %278 = vmatpush1.bf16.msra.mxu0 0
      %279 = vmatprep.subr.bf16.mxu0 0
      %280 = vmatpush1.bf16.msra.mxu0 0
      %281 = vmatprep.subr.bf16.mxu0 0
      %282 = vmatpush1.bf16.msra.mxu0 0
      %283 = vmatprep.subr.bf16.mxu0 0
      %284 = vmatpush1.bf16.msra.mxu0 0
      %285 = vmatprep.subr.bf16.mxu0 0
      %286 = vmatpush1.bf16.msra.mxu0 0
      %287 = vmatprep.subr.bf16.mxu0 0
      %288 = vmatpush1.bf16.msra.mxu0 0
      %289 = vmatprep.mubr.bf16.mxu0 0
      %290 = vmatmul.mubr.bf16.gmra.mrb[0].mxu0 %v192
      %v291 = vpop.f32.mrb[0].mxu0
      %v292 = vadd.f32 0.0, %v291
      %v293 = vpop.f32.mrb[0].mxu0
      %v294 = vpop.f32.mrb[0].mxu0
      %v295 = vpop.f32.mrb[0].mxu0
      %296 = vdwg.mxu0
      %v297 = vadd.f32 %v191, %v292
      %vm298 = vcmask 64512
      %299 = vst.msk [vmem:[#allocation2] sm:$0xff] %vm298, %v297
      // Predicated region
      $region33: #{tpu_custom_call.1} parent=27 // pred_check
        %p300 = pneg %p185
      $region34: #{tpu_custom_call.1} parent=27 // pred_check_branch
        %302 = sbr.rel (%p300) target = $region36
      $region35: #{tpu_custom_call.1} parent=27 // pred_region
        %v303 = vld [vmem:[#allocation2] sm:$0xff]
        %v304 = vpack.c.bf16 %v303, %v303
        %vm305 = vcmask 60416
        %306 = vst.msk [vmem:[%s183] sm:$0xf] %vm305, %v304
      $region36: #{tpu_custom_call.1} parent=27 // pred_fallthru
        _
      %p307 = scmp.lt.s32.totalorder %s17, 1
      %s308 = scalar_select %p307, %s17, 1
      %s309 = smul.addr %s308, 4
      %s310 = scalar_lea.vmem %s2, %s309
      // Predicated region
      $region37: #{tpu_custom_call.1} parent=27 // pred_check
        %p311 = pneg %p97
      $region38: #{tpu_custom_call.1} parent=27 // pred_check_branch
        %313 = sbr.rel (%p311) target = $region40
      $region39: #{tpu_custom_call.1} parent=27 // pred_region
        _
      $region40: #{tpu_custom_call.1} parent=27 // pred_fallthru
        _
    $region28: #{tpu_custom_call.1} parent=5 // pred_fallthru
      _
    %p314 = scmp.le.s32.totalorder 2, %s8
    // Predicated region
    $region41: #{tpu_custom_call.1} parent=5 // pred_check
      %p315 = pneg %p314
    $region42: #{tpu_custom_call.1} parent=5 // pred_check_branch
      %317 = sbr.rel (%p315) target = $region44
    $region43: #{tpu_custom_call.1} parent=5 // pred_region
      %s318 = ssub.s32 %s8, 2
      // Predicated region
      $region45: #{tpu_custom_call.1} parent=43 // pred_check
        %p319 = pneg %p103
      $region46: #{tpu_custom_call.1} parent=43 // pred_check_branch
        %321 = sbr.rel (%p319) target = $region48
      $region47: #{tpu_custom_call.1} parent=43 // pred_region
        %p322 = scmp.lt.s32.totalorder %s19, 1
        %s323 = scalar_select %p322, %s19, 1
        %s324 = smul.addr %s323, 4
        %s325 = scalar_lea.vmem %s2, %s324
      $region48: #{tpu_custom_call.1} parent=43 // pred_fallthru
        _
    $region44: #{tpu_custom_call.1} parent=5 // pred_fallthru
      _
  $region6: #{tpu_custom_call.1} parent=0 // loop_footer
    %s12 = sadd.s32 1, %s8
  $region7: #{tpu_custom_call.1} parent=0 // loop_footer_branch
    %7 = sbr.rel target = $region3
  $region8: #{tpu_custom_call.1} parent=0 // loop_exit
    _

</llo_original>
